<compile_context>
chip_gen: v5e
topology: v5e:2x2
jax: 0.10.0
libtpu: 0.0.40
codegen_flags: <defaults>
</compile_context>

<pallas_src>
import jax
import jax.numpy as jnp
from jax.experimental import pallas as pl
from jax.experimental.pallas import tpu as pltpu


def _round_up(n, m):
    return ((n + m - 1) // m) * m


def _pad_to(a, shape):
    """Zero-pad array `a` up to `shape` (trailing padding only)."""
    pads = [(0, t - s) for s, t in zip(a.shape, shape)]
    return jnp.pad(a, pads)


def _min_sublane(dtype):
    """Minimum sublane multiple for a streamed tile of this dtype."""
    return 8 * (4 // jnp.dtype(dtype).itemsize)


def _default_act_dtype():
    """bf16 elementwise on chips with bf16 VPU/EUP (v6e/v7x), else f32."""
    try:
        kind = jax.devices()[0].device_kind.lower()
    except Exception:
        return jnp.float32
    for old in ("v2", "v3", "v4", "v5"):
        if old in kind:
            return jnp.float32
    return jnp.bfloat16


def mlp_kernel(x_ref, w1_ref, b1_ref, w2_ref, b2_ref, w3_ref, b3_ref, o_ref):
    """Fused 3-layer MLP with sigmoid activations on one (tm, *) batch tile."""
    mxu_dtype = w1_ref.dtype        # MXU operand dtype (bf16)
    act_dtype = b1_ref.dtype        # elementwise dtype chosen at call boundary

    def sigmoid(z):
        # Single EUP transcendental (tanh); the mul/add go to free VALU slots.
        half = jnp.asarray(0.5, z.dtype)
        return half * jnp.tanh(half * z) + half

    x = x_ref[...]                  # (tm, 128) already in mxu_dtype

    # fc1: (tm, 128) @ (128, 512) -> (tm, 512); f32 accumulate on the MXU.
    h = jnp.dot(x, w1_ref[...], preferred_element_type=jnp.float32)
    h = sigmoid(h.astype(act_dtype) + b1_ref[...])

    # fc2: (tm, 512) @ (512, 256) -> (tm, 256)
    h = jnp.dot(h.astype(mxu_dtype), w2_ref[...],
                preferred_element_type=jnp.float32)
    h = sigmoid(h.astype(act_dtype) + b2_ref[...])

    # fc3: (tm, 256) @ (256, 128) -> (tm, 128)
    h = jnp.dot(h.astype(mxu_dtype), w3_ref[...],
                preferred_element_type=jnp.float32)
    o_ref[...] = sigmoid(h.astype(act_dtype) + b3_ref[...]).astype(o_ref.dtype)


def mlp_forward(x, w1, b1, w2, b2, w3, b3, *, block_m=512,
                mxu_dtype=jnp.bfloat16, act_dtype=None,
                out_dtype=jnp.bfloat16):
    """x: (B, 64). w_i: (in, out). b_i: (out,).

    Returns (B, num_classes) in `out_dtype`.  Features are lane-padded to
    multiples of 128 (500->512, 200->256, K 64->128, C->128) and the batch is
    padded to a whole number of sublane-aligned tiles.  Zero padding leaves the
    valid region exact; padded rows/cols are sliced off before returning.
    """
    if act_dtype is None:
        act_dtype = _default_act_dtype()

    B, K = x.shape
    H1, H2, C = w1.shape[1], w2.shape[1], w3.shape[1]
    Kp = _round_up(K, 128)
    H1p, H2p, Cp = _round_up(H1, 128), _round_up(H2, 128), _round_up(C, 128)

    # Batch tiling: avoid pathological padding (tile ~ B/n_tiles, not block_m),
    # keep sublane alignment for the packed streamed dtypes, and give the grid
    # >= 2 steps when the batch allows it so v7x can use both TensorCores.
    sublane = max(_min_sublane(mxu_dtype), _min_sublane(out_dtype))
    min_tiles = 2 if B >= 2 * sublane else 1
    n_tiles = max(min_tiles, pl.cdiv(B, block_m))
    tm = _round_up(pl.cdiv(B, n_tiles), sublane)
    Bp = tm * n_tiles

    xp = _pad_to(x.astype(mxu_dtype), (Bp, Kp))          # streamed, bf16
    w1p = _pad_to(w1.astype(mxu_dtype), (Kp, H1p))       # resident
    w2p = _pad_to(w2.astype(mxu_dtype), (H1p, H2p))
    w3p = _pad_to(w3.astype(mxu_dtype), (H2p, Cp))
    b1p = _pad_to(b1.astype(act_dtype).reshape(1, -1), (1, H1p))
    b2p = _pad_to(b2.astype(act_dtype).reshape(1, -1), (1, H2p))
    b3p = _pad_to(b3.astype(act_dtype).reshape(1, -1), (1, Cp))

    out = pl.pallas_call(
        mlp_kernel,
        out_shape=jax.ShapeDtypeStruct((Bp, Cp), out_dtype),
        grid_spec=pltpu.PrefetchScalarGridSpec(
            num_scalar_prefetch=0,
            grid=(Bp // tm,),
            in_specs=[
                pl.BlockSpec((tm, Kp), lambda i: (i, 0)),     # x tile (streamed)
                pl.BlockSpec((Kp, H1p), lambda i: (0, 0)),    # w1 (resident)
                pl.BlockSpec((1, H1p), lambda i: (0, 0)),     # b1
                pl.BlockSpec((H1p, H2p), lambda i: (0, 0)),   # w2
                pl.BlockSpec((1, H2p), lambda i: (0, 0)),     # b2
                pl.BlockSpec((H2p, Cp), lambda i: (0, 0)),    # w3
                pl.BlockSpec((1, Cp), lambda i: (0, 0)),      # b3
            ],
            out_specs=pl.BlockSpec((tm, Cp), lambda i: (i, 0)),
        ),
        compiler_params=pltpu.CompilerParams(
            dimension_semantics=("parallel",)),
    )(xp, w1p, b1p, w2p, b2p, w3p, b3p)

    return out[:B, :C]


def _init_linear(key, fan_in, fan_out):
    """Deterministic init mimicking nn.Linear default (uniform +/- 1/sqrt(fan_in)).
    Returns weight in (in, out) layout (transposed vs. PyTorch's (out, in))."""
    kw, kb = jax.random.split(key)
    bound = 1.0 / jnp.sqrt(jnp.float32(fan_in))
    w = jax.random.uniform(kw, (fan_in, fan_out), jnp.float32, -bound, bound)
    b = jax.random.uniform(kb, (fan_out,), jnp.float32, -bound, bound)
    return w, b


def reference_forward(x, w1, b1, w2, b2, w3, b3):
    """Pure-JAX f32 reference matching the PyTorch forward semantics."""
    h = jax.nn.sigmoid(x @ w1 + b1)
    h = jax.nn.sigmoid(h @ w2 + b2)
    return jax.nn.sigmoid(h @ w3 + b3)


if __name__ == "__main__":
    num_classes = 10
    batch = 8

    root = jax.random.PRNGKey(0)
    k_x, k1, k2, k3 = jax.random.split(root, 4)

    x = jax.random.normal(k_x, (batch, 64), jnp.float32)
    w1, b1 = _init_linear(k1, 64, 500)
    w2, b2 = _init_linear(k2, 500, 200)
    w3, b3 = _init_linear(k3, 200, num_classes)

    out = mlp_forward(x, w1, b1, w2, b2, w3, b3)
    out = jax.block_until_ready(out)

    ref = reference_forward(x, w1, b1, w2, b2, w3, b3)
    assert out.shape == (batch, num_classes), out.shape
    # Tolerance covers bf16 MXU operands + bf16 activations/output.
    assert jnp.allclose(out.astype(jnp.float32), ref, atol=2e-2, rtol=0.0), \
        "mismatch vs reference"

    print("KERNEL_OK")
</pallas_src>

<mosaic_0001>
module attributes {stable_mosaic.version = 11 : i64} {
  func.func @mlp_kernel(%arg0: i32, %arg1: memref<16x128xbf16, #tpu.memory_space<vmem>>, %arg2: memref<128x512xbf16, #tpu.memory_space<vmem>>, %arg3: memref<1x512xbf16, #tpu.memory_space<vmem>>, %arg4: memref<512x256xbf16, #tpu.memory_space<vmem>>, %arg5: memref<1x256xbf16, #tpu.memory_space<vmem>>, %arg6: memref<256x128xbf16, #tpu.memory_space<vmem>>, %arg7: memref<1x128xbf16, #tpu.memory_space<vmem>>, %arg8: memref<16x128xbf16, #tpu.memory_space<vmem>>) attributes {dimension_semantics = [#tpu.dimension_semantics<parallel>], iteration_bounds = array<i64: 1>, scalar_prefetch = 0 : i64, scratch_operands = 0 : i64, tpu.core_type = #tpu.core_type<tc>, window_params = [{transform_indices = @transform_0, window_bounds = array<i64: 16, 128>}, {pipeline_mode = #tpu.pipeline_mode<synchronous>, transform_indices = @transform_1, window_bounds = array<i64: 128, 512>}, {pipeline_mode = #tpu.pipeline_mode<synchronous>, transform_indices = @transform_2, window_bounds = array<i64: 1, 512>}, {pipeline_mode = #tpu.pipeline_mode<synchronous>, transform_indices = @transform_3, window_bounds = array<i64: 512, 256>}, {pipeline_mode = #tpu.pipeline_mode<synchronous>, transform_indices = @transform_4, window_bounds = array<i64: 1, 256>}, {pipeline_mode = #tpu.pipeline_mode<synchronous>, transform_indices = @transform_5, window_bounds = array<i64: 256, 128>}, {pipeline_mode = #tpu.pipeline_mode<synchronous>, transform_indices = @transform_6, window_bounds = array<i64: 1, 128>}, {transform_indices = @transform_7, window_bounds = array<i64: 16, 128>}]} {
    %c0 = arith.constant 0 : index
    %c0_0 = arith.constant 0 : index
    %0 = vector.load %arg1[%c0, %c0_0] : memref<16x128xbf16, #tpu.memory_space<vmem>>, vector<16x128xbf16>
    %c0_1 = arith.constant 0 : index
    %c0_2 = arith.constant 0 : index
    %1 = vector.load %arg2[%c0_1, %c0_2] : memref<128x512xbf16, #tpu.memory_space<vmem>>, vector<128x512xbf16>
    %cst = arith.constant dense<0.000000e+00> : vector<16x512xf32>
    %2 = tpu.matmul %0, %1, %cst {dimension_numbers = #tpu.dot_dimension_numbers<[1], [0], [0], [1], [0, 0, 1, 1], [], []>} : vector<16x128xbf16>, vector<128x512xbf16>, vector<16x512xf32> -> vector<16x512xf32>
    %3 = arith.truncf %2 : vector<16x512xf32> to vector<16x512xbf16>
    %c0_3 = arith.constant 0 : index
    %c0_4 = arith.constant 0 : index
    %4 = vector.load %arg3[%c0_3, %c0_4] : memref<1x512xbf16, #tpu.memory_space<vmem>>, vector<1x512xbf16>
    %5 = vector.broadcast %4 : vector<1x512xbf16> to vector<16x512xbf16>
    %6 = arith.addf %3, %5 : vector<16x512xbf16>
    %cst_5 = arith.constant 5.000000e-01 : bf16
    %7 = vector.broadcast %cst_5 : bf16 to vector<16x512xbf16>
    %8 = arith.mulf %7, %6 : vector<16x512xbf16>
    %9 = math.tanh %8 : vector<16x512xbf16>
    %cst_6 = arith.constant 5.000000e-01 : bf16
    %10 = vector.broadcast %cst_6 : bf16 to vector<16x512xbf16>
    %11 = arith.mulf %10, %9 : vector<16x512xbf16>
    %cst_7 = arith.constant 5.000000e-01 : bf16
    %12 = vector.broadcast %cst_7 : bf16 to vector<16x512xbf16>
    %13 = arith.addf %11, %12 : vector<16x512xbf16>
    %c0_8 = arith.constant 0 : index
    %c0_9 = arith.constant 0 : index
    %14 = vector.load %arg4[%c0_8, %c0_9] : memref<512x256xbf16, #tpu.memory_space<vmem>>, vector<512x256xbf16>
    %cst_10 = arith.constant dense<0.000000e+00> : vector<16x256xf32>
    %15 = tpu.matmul %13, %14, %cst_10 {dimension_numbers = #tpu.dot_dimension_numbers<[1], [0], [0], [1], [0, 0, 1, 1], [], []>} : vector<16x512xbf16>, vector<512x256xbf16>, vector<16x256xf32> -> vector<16x256xf32>
    %16 = arith.truncf %15 : vector<16x256xf32> to vector<16x256xbf16>
    %c0_11 = arith.constant 0 : index
    %c0_12 = arith.constant 0 : index
    %17 = vector.load %arg5[%c0_11, %c0_12] : memref<1x256xbf16, #tpu.memory_space<vmem>>, vector<1x256xbf16>
    %18 = vector.broadcast %17 : vector<1x256xbf16> to vector<16x256xbf16>
    %19 = arith.addf %16, %18 : vector<16x256xbf16>
    %cst_13 = arith.constant 5.000000e-01 : bf16
    %20 = vector.broadcast %cst_13 : bf16 to vector<16x256xbf16>
    %21 = arith.mulf %20, %19 : vector<16x256xbf16>
    %22 = math.tanh %21 : vector<16x256xbf16>
    %cst_14 = arith.constant 5.000000e-01 : bf16
    %23 = vector.broadcast %cst_14 : bf16 to vector<16x256xbf16>
    %24 = arith.mulf %23, %22 : vector<16x256xbf16>
    %cst_15 = arith.constant 5.000000e-01 : bf16
    %25 = vector.broadcast %cst_15 : bf16 to vector<16x256xbf16>
    %26 = arith.addf %24, %25 : vector<16x256xbf16>
    %c0_16 = arith.constant 0 : index
    %c0_17 = arith.constant 0 : index
    %27 = vector.load %arg6[%c0_16, %c0_17] : memref<256x128xbf16, #tpu.memory_space<vmem>>, vector<256x128xbf16>
    %cst_18 = arith.constant dense<0.000000e+00> : vector<16x128xf32>
    %28 = tpu.matmul %26, %27, %cst_18 {dimension_numbers = #tpu.dot_dimension_numbers<[1], [0], [0], [1], [0, 0, 1, 1], [], []>} : vector<16x256xbf16>, vector<256x128xbf16>, vector<16x128xf32> -> vector<16x128xf32>
    %29 = arith.truncf %28 : vector<16x128xf32> to vector<16x128xbf16>
    %c0_19 = arith.constant 0 : index
    %c0_20 = arith.constant 0 : index
    %30 = vector.load %arg7[%c0_19, %c0_20] : memref<1x128xbf16, #tpu.memory_space<vmem>>, vector<1x128xbf16>
    %31 = vector.broadcast %30 : vector<1x128xbf16> to vector<16x128xbf16>
    %32 = arith.addf %29, %31 : vector<16x128xbf16>
    %cst_21 = arith.constant 5.000000e-01 : bf16
    %33 = vector.broadcast %cst_21 : bf16 to vector<16x128xbf16>
    %34 = arith.mulf %33, %32 : vector<16x128xbf16>
    %35 = math.tanh %34 : vector<16x128xbf16>
    %cst_22 = arith.constant 5.000000e-01 : bf16
    %36 = vector.broadcast %cst_22 : bf16 to vector<16x128xbf16>
    %37 = arith.mulf %36, %35 : vector<16x128xbf16>
    %cst_23 = arith.constant 5.000000e-01 : bf16
    %38 = vector.broadcast %cst_23 : bf16 to vector<16x128xbf16>
    %39 = arith.addf %37, %38 : vector<16x128xbf16>
    %c0_24 = arith.constant 0 : index
    %c0_25 = arith.constant 0 : index
    %40 = vector.load %arg8[%c0_24, %c0_25] : memref<16x128xbf16, #tpu.memory_space<vmem>>, vector<16x128xbf16>
    tpu.vector_store %arg8[%c0_24, %c0_25], %39 {strides = array<i32>} : memref<16x128xbf16, #tpu.memory_space<vmem>>, vector<16x128xbf16>,
    return
  }
  func.func @transform_0(%arg0: i32) -> (i32, i32) {
    %c0_i32 = arith.constant 0 : i32
    %c0_i32_0 = arith.constant 0 : i32
    return %arg0, %c0_i32 : i32, i32
  }
  func.func @transform_1(%arg0: i32) -> (i32, i32) {
    %c0_i32 = arith.constant 0 : i32
    %c0_i32_0 = arith.constant 0 : i32
    %c0_i32_1 = arith.constant 0 : i32
    return %c0_i32, %c0_i32_0 : i32, i32
  }
  func.func @transform_2(%arg0: i32) -> (i32, i32) {
    %c0_i32 = arith.constant 0 : i32
    %c0_i32_0 = arith.constant 0 : i32
    %c0_i32_1 = arith.constant 0 : i32
    return %c0_i32, %c0_i32_0 : i32, i32
  }
  func.func @transform_3(%arg0: i32) -> (i32, i32) {
    %c0_i32 = arith.constant 0 : i32
    %c0_i32_0 = arith.constant 0 : i32
    %c0_i32_1 = arith.constant 0 : i32
    return %c0_i32, %c0_i32_0 : i32, i32
  }
  func.func @transform_4(%arg0: i32) -> (i32, i32) {
    %c0_i32 = arith.constant 0 : i32
    %c0_i32_0 = arith.constant 0 : i32
    %c0_i32_1 = arith.constant 0 : i32
    return %c0_i32, %c0_i32_0 : i32, i32
  }
  func.func @transform_5(%arg0: i32) -> (i32, i32) {
    %c0_i32 = arith.constant 0 : i32
    %c0_i32_0 = arith.constant 0 : i32
    %c0_i32_1 = arith.constant 0 : i32
    return %c0_i32, %c0_i32_0 : i32, i32
  }
  func.func @transform_6(%arg0: i32) -> (i32, i32) {
    %c0_i32 = arith.constant 0 : i32
    %c0_i32_0 = arith.constant 0 : i32
    %c0_i32_1 = arith.constant 0 : i32
    return %c0_i32, %c0_i32_0 : i32, i32
  }
  func.func @transform_7(%arg0: i32) -> (i32, i32) {
    %c0_i32 = arith.constant 0 : i32
    %c0_i32_0 = arith.constant 0 : i32
    return %arg0, %c0_i32 : i32, i32
  }
}

</mosaic_0001>

<llo_original>
// kernel: tpu_custom_call.1
$region0: #{tpu_custom_call.1}
  #allocation0 [shape = 'u32[]', space=smem, size = 0x4, offset = 0x4, fixed_abs, tag = 'smem constant byte address 0x4 - core index']
  #allocation1 [shape = 'u32[72,128]{1,0:T(1,128)}', space=vmem, size = 0x9000, scoped, tag = 'internal scratch']
  %s0 = inlined_call_operand.hbm [shape: bf16[16,128], index: 0, kind: input, shape index: {}]
  %s1 = inlined_call_operand.hbm [shape: bf16[128,512], index: 1, kind: input, shape index: {}]
  %s2 = inlined_call_operand.hbm [shape: bf16[1,512], index: 2, kind: input, shape index: {}]
  %s3 = inlined_call_operand.hbm [shape: bf16[512,256], index: 3, kind: input, shape index: {}]
  %s4 = inlined_call_operand.vmem [shape: bf16[1,256], index: 4, kind: input, shape index: {}]
  %s5 = inlined_call_operand.hbm [shape: bf16[256,128], index: 5, kind: input, shape index: {}]
  %s6 = inlined_call_operand.vmem [shape: bf16[1,128], index: 6, kind: input, shape index: {}]
  %s7 = inlined_call_operand.hbm [shape: bf16[16,128], index: 7, kind: output, shape index: {}]
  %s8 = sld [smem:[#allocation0]]
  $region58: #{tpu_custom_call.1} parent=0
    _
  %s10 = ssub.s32 1, %s8
  %s11 = scalar_select 0, %s10, %s8
  $region1: #{tpu_custom_call.1} parent=0
    #allocation2 [shape = 'u8[4096]{0}', space=vmem, size = 0x1000, scoped, tag = 'input window, operand 0, single buffered']
    #allocation3 [shape = 's32[1]{0}', space=sflag, size = 0x4, scoped, tag = 'scoped memory for tpu_custom_call.1']
    #allocation4 [shape = 's32[1]{0}', space=sflag, size = 0x4, scoped, tag = 'scoped memory for tpu_custom_call.1']
    #allocation5 [shape = 'u8[131072]{0}', space=vmem, size = 0x20000, scoped, tag = 'input window, operand 1, single buffered']
    #allocation6 [shape = 's32[1]{0}', space=sflag, size = 0x4, scoped, tag = 'scoped memory for tpu_custom_call.1']
    #allocation7 [shape = 'u8[2048]{0}', space=vmem, size = 0x800, scoped, tag = 'input window, operand 2, single buffered']
    #allocation8 [shape = 'u8[262144]{0}', space=vmem, size = 0x40000, scoped, tag = 'input window, operand 3, single buffered']
    #allocation9 [shape = 's32[1]{0}', space=sflag, size = 0x4, scoped, tag = 'scoped memory for tpu_custom_call.1']
    #allocation10 [shape = 'u8[65536]{0}', space=vmem, size = 0x10000, scoped, tag = 'input window, operand 5, single buffered']
    #allocation11 [shape = 'u8[4096]{0}', space=vmem, size = 0x1000, scoped, tag = 'output window, operand 0, single buffered']
    %12 = vsyncpa [#allocation3], 0
    %13 = vsyncpa [#allocation6], 0
    %14 = vsyncpa [#allocation9], 0
    %15 = vsyncpa [#allocation4], 0
    // Predicated region
    $region2: #{tpu_custom_call.1} parent=1 // pred_check
      _
    $region3: #{tpu_custom_call.1} parent=1 // pred_check_branch
      %17 = sbr.rel (0) target = $region5
    $region4: #{tpu_custom_call.1} parent=1 // pred_region
      %19 = vsyncadd [#allocation3], 0
      %s20 = sshll.u32 %s0, 4
      %s21 = int_to_ptr.hbm [resolvable:$true] %s20
      %s22 = sshll.u32 [#allocation2], 4
      %s23 = int_to_ptr.vmem [resolvable:$true] %s22
      %28 = dma.hbm_to_vmem [thread:$0]  %s21, 128, %s23, [#allocation3], 64, 64, 4
    $region5: #{tpu_custom_call.1} parent=1 // pred_fallthru
      _
    // Predicated region
    $region6: #{tpu_custom_call.1} parent=1 // pred_check
      _
    $region7: #{tpu_custom_call.1} parent=1 // pred_check_branch
      %30 = sbr.rel (0) target = $region9
    $region8: #{tpu_custom_call.1} parent=1 // pred_region
      %32 = vsyncadd [#allocation6], 0
      %s33 = sshll.u32 %s1, 4
      %s34 = int_to_ptr.hbm [resolvable:$true] %s33
      %s35 = sshll.u32 [#allocation5], 4
      %s36 = int_to_ptr.vmem [resolvable:$true] %s35
      %41 = dma.hbm_to_vmem [thread:$0]  %s34, 4096, %s36, [#allocation6], 256, 256, 16
    $region9: #{tpu_custom_call.1} parent=1 // pred_fallthru
      _
    // Predicated region
    $region10: #{tpu_custom_call.1} parent=1 // pred_check
      _
    $region11: #{tpu_custom_call.1} parent=1 // pred_check_branch
      %43 = sbr.rel (0) target = $region13
    $region12: #{tpu_custom_call.1} parent=1 // pred_region
      %45 = vsyncadd [#allocation6], 0
      %s47 = sshll.u32 %s2, 4
      %s48 = int_to_ptr.hbm [resolvable:$true] %s47
      %s49 = sshll.u32 [#allocation7], 4
      %s50 = int_to_ptr.vmem [resolvable:$true] %s49
      %52 = dma.hbm_to_vmem [thread:$0]  %s48, 64, %s50, [#allocation6]
    $region13: #{tpu_custom_call.1} parent=1 // pred_fallthru
      _
    // Predicated region
    $region14: #{tpu_custom_call.1} parent=1 // pred_check
      _
    $region15: #{tpu_custom_call.1} parent=1 // pred_check_branch
      %54 = sbr.rel (0) target = $region17
    $region16: #{tpu_custom_call.1} parent=1 // pred_region
      %56 = vsyncadd [#allocation9], 0
      %s57 = sshll.u32 %s3, 4
      %s58 = int_to_ptr.hbm [resolvable:$true] %s57
      %s59 = sshll.u32 [#allocation8], 4
      %s60 = int_to_ptr.vmem [resolvable:$true] %s59
      %65 = dma.hbm_to_vmem [thread:$0]  %s58, 8192, %s60, [#allocation9], 128, 128, 8
    $region17: #{tpu_custom_call.1} parent=1 // pred_fallthru
      _
    // Predicated region
    $region18: #{tpu_custom_call.1} parent=1 // pred_check
      _
    $region19: #{tpu_custom_call.1} parent=1 // pred_check_branch
      %67 = sbr.rel (0) target = $region21
    $region20: #{tpu_custom_call.1} parent=1 // pred_region
      _
    $region21: #{tpu_custom_call.1} parent=1 // pred_fallthru
      _
    // Predicated region
    $region22: #{tpu_custom_call.1} parent=1 // pred_check
      _
    $region23: #{tpu_custom_call.1} parent=1 // pred_check_branch
      %69 = sbr.rel (0) target = $region25
    $region24: #{tpu_custom_call.1} parent=1 // pred_region
      %71 = vsyncadd [#allocation9], 0
      %s72 = sshll.u32 %s5, 4
      %s73 = int_to_ptr.hbm [resolvable:$true] %s72
      %s74 = sshll.u32 [#allocation10], 4
      %s75 = int_to_ptr.vmem [resolvable:$true] %s74
      %80 = dma.hbm_to_vmem [thread:$0]  %s73, 2048, %s75, [#allocation9], 64, 64, 4
    $region25: #{tpu_custom_call.1} parent=1 // pred_fallthru
      _
    // Predicated region
    $region26: #{tpu_custom_call.1} parent=1 // pred_check
      _
    $region27: #{tpu_custom_call.1} parent=1 // pred_check_branch
      %82 = sbr.rel (0) target = $region29
    $region28: #{tpu_custom_call.1} parent=1 // pred_region
      _
    $region29: #{tpu_custom_call.1} parent=1 // pred_fallthru
      _
    // Predicated region
    $region30: #{tpu_custom_call.1} parent=1 // pred_check
      _
    $region31: #{tpu_custom_call.1} parent=1 // pred_check_branch
      %84 = sbr.rel (0) target = $region33
    $region32: #{tpu_custom_call.1} parent=1 // pred_region
      %86 = dma.done [#allocation3], 128
    $region33: #{tpu_custom_call.1} parent=1 // pred_fallthru
      _
    // Predicated region
    $region34: #{tpu_custom_call.1} parent=1 // pred_check
      _
    $region35: #{tpu_custom_call.1} parent=1 // pred_check_branch
      %88 = sbr.rel (0) target = $region37
    $region36: #{tpu_custom_call.1} parent=1 // pred_region
      %90 = dma.done [#allocation6], 4096
    $region37: #{tpu_custom_call.1} parent=1 // pred_fallthru
      _
    // Predicated region
    $region38: #{tpu_custom_call.1} parent=1 // pred_check
      _
    $region39: #{tpu_custom_call.1} parent=1 // pred_check_branch
      %92 = sbr.rel (0) target = $region41
    $region40: #{tpu_custom_call.1} parent=1 // pred_region
      %94 = dma.done [#allocation6], 64
    $region41: #{tpu_custom_call.1} parent=1 // pred_fallthru
      _
    // Predicated region
    $region42: #{tpu_custom_call.1} parent=1 // pred_check
      _
    $region43: #{tpu_custom_call.1} parent=1 // pred_check_branch
      %96 = sbr.rel (0) target = $region45
    $region44: #{tpu_custom_call.1} parent=1 // pred_region
      %98 = dma.done [#allocation9], 8192
    $region45: #{tpu_custom_call.1} parent=1 // pred_fallthru
      _
    // Predicated region
    $region46: #{tpu_custom_call.1} parent=1 // pred_check
      _
    $region47: #{tpu_custom_call.1} parent=1 // pred_check_branch
      %100 = sbr.rel (0) target = $region49
    $region48: #{tpu_custom_call.1} parent=1 // pred_region
      %102 = dma.done [#allocation9], 2048
    $region49: #{tpu_custom_call.1} parent=1 // pred_fallthru
      _
    %v103 = vld [vmem:[#allocation2] sm:$0xf]
    %v104 = vld [vmem:[#allocation2 + $0x4] sm:$0xf]
    %v105 = vld [vmem:[#allocation5] sm:$0xff]
    %v106 = vld [vmem:[#allocation5 + $0x8] sm:$0xff]
    %v107 = vld [vmem:[#allocation5 + $0x10] sm:$0xff]
    %v108 = vld [vmem:[#allocation5 + $0x18] sm:$0xff]
    %v109 = vld [vmem:[#allocation5 + $0x20] sm:$0xff]
    %v110 = vld [vmem:[#allocation5 + $0x28] sm:$0xff]
    %v111 = vld [vmem:[#allocation5 + $0x30] sm:$0xff]
    %v112 = vld [vmem:[#allocation5 + $0x38] sm:$0xff]
    %v113 = vld [vmem:[#allocation5 + $0x40] sm:$0xff]
    %v114 = vld [vmem:[#allocation5 + $0x48] sm:$0xff]
    %v115 = vld [vmem:[#allocation5 + $0x50] sm:$0xff]
    %v116 = vld [vmem:[#allocation5 + $0x58] sm:$0xff]
    %v117 = vld [vmem:[#allocation5 + $0x60] sm:$0xff]
    %v118 = vld [vmem:[#allocation5 + $0x68] sm:$0xff]
    %v119 = vld [vmem:[#allocation5 + $0x70] sm:$0xff]
    %v120 = vld [vmem:[#allocation5 + $0x78] sm:$0xff]
    %v121 = vld [vmem:[#allocation5 + $0x80] sm:$0xff]
    %v122 = vld [vmem:[#allocation5 + $0x88] sm:$0xff]
    %v123 = vld [vmem:[#allocation5 + $0x90] sm:$0xff]
    %v124 = vld [vmem:[#allocation5 + $0x98] sm:$0xff]
    %v125 = vld [vmem:[#allocation5 + $0xa0] sm:$0xff]
    %v126 = vld [vmem:[#allocation5 + $0xa8] sm:$0xff]
    %v127 = vld [vmem:[#allocation5 + $0xb0] sm:$0xff]
    %v128 = vld [vmem:[#allocation5 + $0xb8] sm:$0xff]
    %v129 = vld [vmem:[#allocation5 + $0xc0] sm:$0xff]
    %v130 = vld [vmem:[#allocation5 + $0xc8] sm:$0xff]
    %v131 = vld [vmem:[#allocation5 + $0xd0] sm:$0xff]
    %v132 = vld [vmem:[#allocation5 + $0xd8] sm:$0xff]
    %v133 = vld [vmem:[#allocation5 + $0xe0] sm:$0xff]
    %v134 = vld [vmem:[#allocation5 + $0xe8] sm:$0xff]
    %v135 = vld [vmem:[#allocation5 + $0xf0] sm:$0xff]
    %v136 = vld [vmem:[#allocation5 + $0xf8] sm:$0xff]
    %v139 = vunpack.c.l.b16 %v103
    %v140 = vunpack.c.l.b16 %v104
    %v141 = vpack.c.b16 %v140, %v139
    %v175 = vunpack.c.l.b16 %v105
    %v176 = vunpack.c.h.b16 %v105
    %v177 = vunpack.c.l.b16 %v106
    %v178 = vunpack.c.h.b16 %v106
    %v179 = vunpack.c.l.b16 %v107
    %v180 = vunpack.c.h.b16 %v107
    %v181 = vunpack.c.l.b16 %v108
    %v182 = vunpack.c.h.b16 %v108
    %v183 = vunpack.c.l.b16 %v109
    %v184 = vunpack.c.h.b16 %v109
    %v185 = vunpack.c.l.b16 %v110
    %v186 = vunpack.c.h.b16 %v110
    %v187 = vunpack.c.l.b16 %v111
    %v188 = vunpack.c.h.b16 %v111
    %v189 = vunpack.c.l.b16 %v112
    %v190 = vunpack.c.h.b16 %v112
    %v191 = vunpack.c.l.b16 %v113
    %v192 = vunpack.c.h.b16 %v113
    %v193 = vunpack.c.l.b16 %v114
    %v194 = vunpack.c.h.b16 %v114
    %v195 = vunpack.c.l.b16 %v115
    %v196 = vunpack.c.h.b16 %v115
    %v197 = vunpack.c.l.b16 %v116
    %v198 = vunpack.c.h.b16 %v116
    %v199 = vunpack.c.l.b16 %v117
    %v200 = vunpack.c.h.b16 %v117
    %v201 = vunpack.c.l.b16 %v118
    %v202 = vunpack.c.h.b16 %v118
    %v203 = vunpack.c.l.b16 %v119
    %v204 = vunpack.c.h.b16 %v119
    %v205 = vunpack.c.l.b16 %v120
    %v206 = vunpack.c.h.b16 %v120
    %v207 = vunpack.c.l.b16 %v121
    %v208 = vunpack.c.h.b16 %v121
    %v209 = vunpack.c.l.b16 %v122
    %v210 = vunpack.c.h.b16 %v122
    %v211 = vunpack.c.l.b16 %v123
    %v212 = vunpack.c.h.b16 %v123
    %v213 = vunpack.c.l.b16 %v124
    %v214 = vunpack.c.h.b16 %v124
    %v215 = vunpack.c.l.b16 %v125
    %v216 = vunpack.c.h.b16 %v125
    %v217 = vunpack.c.l.b16 %v126
    %v218 = vunpack.c.h.b16 %v126
    %v219 = vunpack.c.l.b16 %v127
    %v220 = vunpack.c.h.b16 %v127
    %v221 = vunpack.c.l.b16 %v128
    %v222 = vunpack.c.h.b16 %v128
    %v223 = vunpack.c.l.b16 %v129
    %v224 = vunpack.c.h.b16 %v129
    %v225 = vunpack.c.l.b16 %v130
    %v226 = vunpack.c.h.b16 %v130
    %v227 = vunpack.c.l.b16 %v131
    %v228 = vunpack.c.h.b16 %v131
    %v229 = vunpack.c.l.b16 %v132
    %v230 = vunpack.c.h.b16 %v132
    %v231 = vunpack.c.l.b16 %v133
    %v232 = vunpack.c.h.b16 %v133
    %v233 = vunpack.c.l.b16 %v134
    %v234 = vunpack.c.h.b16 %v134
    %v235 = vunpack.c.l.b16 %v135
    %v236 = vunpack.c.h.b16 %v135
    %v237 = vunpack.c.l.b16 %v136
    %v238 = vunpack.c.h.b16 %v136
    %v239 = vpack.c.b16 %v179, %v175
    %v240 = vpack.c.b16 %v180, %v176
    %v241 = vpack.c.b16 %v181, %v177
    %v242 = vpack.c.b16 %v182, %v178
    %v243 = vpack.c.b16 %v187, %v183
    %v244 = vpack.c.b16 %v188, %v184
    %v245 = vpack.c.b16 %v189, %v185
    %v246 = vpack.c.b16 %v190, %v186
    %v247 = vpack.c.b16 %v195, %v191
    %v248 = vpack.c.b16 %v196, %v192
    %v249 = vpack.c.b16 %v197, %v193
    %v250 = vpack.c.b16 %v198, %v194
    %v251 = vpack.c.b16 %v203, %v199
    %v252 = vpack.c.b16 %v204, %v200
    %v253 = vpack.c.b16 %v205, %v201
    %v254 = vpack.c.b16 %v206, %v202
    %v255 = vpack.c.b16 %v211, %v207
    %v256 = vpack.c.b16 %v212, %v208
    %v257 = vpack.c.b16 %v213, %v209
    %v258 = vpack.c.b16 %v214, %v210
    %v259 = vpack.c.b16 %v219, %v215
    %v260 = vpack.c.b16 %v220, %v216
    %v261 = vpack.c.b16 %v221, %v217
    %v262 = vpack.c.b16 %v222, %v218
    %v263 = vpack.c.b16 %v227, %v223
    %v264 = vpack.c.b16 %v228, %v224
    %v265 = vpack.c.b16 %v229, %v225
    %v266 = vpack.c.b16 %v230, %v226
    %v267 = vpack.c.b16 %v235, %v231
    %v268 = vpack.c.b16 %v236, %v232
    %v269 = vpack.c.b16 %v237, %v233
    %v270 = vpack.c.b16 %v238, %v234
    %303 = vmatpush.bf16.msra.mxu0 %v267
    %304 = vmatpush.bf16.msra.mxu0 %v263
    %305 = vmatpush.bf16.msra.mxu0 %v259
    %306 = vmatpush.bf16.msra.mxu0 %v255
    %307 = vmatpush.bf16.msra.mxu0 %v251
    %308 = vmatpush.bf16.msra.mxu0 %v247
    %309 = vmatpush.bf16.msra.mxu0 %v243
    %310 = vmatpush.bf16.msra.mxu0 %v239
    %311 = vmatmul.bf16.gmra.mxu0 %v141
    %v312 = vpop.f32.mrf.mxu0
    %v313 = vadd.f32 0.0, %v312
    %v314 = vpop.f32.mrf.mxu0
    %v315 = vadd.f32 0.0, %v314
    %316 = vdwg.mxu0
    %317 = vmatpush.bf16.msra.mxu0 %v268
    %318 = vmatpush.bf16.msra.mxu0 %v264
    %319 = vmatpush.bf16.msra.mxu0 %v260
    %320 = vmatpush.bf16.msra.mxu0 %v256
    %321 = vmatpush.bf16.msra.mxu0 %v252
    %322 = vmatpush.bf16.msra.mxu0 %v248
    %323 = vmatpush.bf16.msra.mxu0 %v244
    %324 = vmatpush.bf16.msra.mxu0 %v240
    %325 = vmatmul.bf16.gmra.mxu0 %v141
    %v326 = vpop.f32.mrf.mxu0
    %v327 = vadd.f32 0.0, %v326
    %v328 = vpop.f32.mrf.mxu0
    %v329 = vadd.f32 0.0, %v328
    %330 = vdwg.mxu0
    %331 = vmatpush.bf16.msra.mxu0 %v269
    %332 = vmatpush.bf16.msra.mxu0 %v265
    %333 = vmatpush.bf16.msra.mxu0 %v261
    %334 = vmatpush.bf16.msra.mxu0 %v257
    %335 = vmatpush.bf16.msra.mxu0 %v253
    %336 = vmatpush.bf16.msra.mxu0 %v249
    %337 = vmatpush.bf16.msra.mxu0 %v245
    %338 = vmatpush.bf16.msra.mxu0 %v241
    %339 = vmatmul.bf16.gmra.mxu0 %v141
    %v340 = vpop.f32.mrf.mxu0
    %v341 = vadd.f32 0.0, %v340
    %v342 = vpop.f32.mrf.mxu0
    %v343 = vadd.f32 0.0, %v342
    %344 = vdwg.mxu0
    %345 = vmatpush.bf16.msra.mxu0 %v270
    %346 = vmatpush.bf16.msra.mxu0 %v266
    %347 = vmatpush.bf16.msra.mxu0 %v262
    %348 = vmatpush.bf16.msra.mxu0 %v258
    %349 = vmatpush.bf16.msra.mxu0 %v254
    %350 = vmatpush.bf16.msra.mxu0 %v250
    %351 = vmatpush.bf16.msra.mxu0 %v246
    %352 = vmatpush.bf16.msra.mxu0 %v242
    %353 = vmatmul.bf16.gmra.mxu0 %v141
    %v354 = vpop.f32.mrf.mxu0
    %v355 = vadd.f32 0.0, %v354
    %v356 = vpop.f32.mrf.mxu0
    %v357 = vadd.f32 0.0, %v356
    %358 = vdwg.mxu0
    %v359 = vpack.c.bf16 %v327, %v313
    %v360 = vpack.c.bf16 %v355, %v341
    %v361 = vpack.c.bf16 %v329, %v315
    %v362 = vpack.c.bf16 %v357, %v343
    %v363 = vld [vmem:[#allocation7] sm:$0xf]
    %365 = vst [vmem:[#allocation1] ss:$9 sm:$0xff] %v363
    %v366 = vld [vmem:[#allocation1] sm:$0xff]
    %v367 = vld [vmem:[#allocation1 + $0x9] sm:$0xff]
    %v368 = vld [vmem:[#allocation1 + $0x12] sm:$0xff]
    %v369 = vld [vmem:[#allocation1 + $0x1b] sm:$0xff]
    %v370 = vpack.i.b16 %v366, %v366
    %v372 = vperm.slane %v370, 0
    %v373 = vpack.i.b16 %v367, %v367
    %v375 = vperm.slane %v373, 0
    %v376 = vpack.i.b16 %v368, %v368
    %v378 = vperm.slane %v376, 0
    %v379 = vpack.i.b16 %v369, %v369
    %v381 = vperm.slane %v379, 0
    %v382 = vunpack.c.l.bf16 %v359
    %v383 = vunpack.c.h.bf16 %v359
    %v384 = vunpack.c.l.bf16 %v360
    %v385 = vunpack.c.h.bf16 %v360
    %v386 = vunpack.c.l.bf16 %v361
    %v387 = vunpack.c.h.bf16 %v361
    %v388 = vunpack.c.l.bf16 %v362
    %v389 = vunpack.c.h.bf16 %v362
    %v390 = vunpack.c.l.bf16 %v372
    %v391 = vunpack.c.l.bf16 %v375
    %v392 = vunpack.c.l.bf16 %v378
    %v393 = vunpack.c.l.bf16 %v381
    %v394 = vadd.f32 %v382, %v390
    %v395 = vadd.f32 %v383, %v391
    %v396 = vadd.f32 %v384, %v392
    %v397 = vadd.f32 %v385, %v393
    %v398 = vadd.f32 %v386, %v390
    %v399 = vadd.f32 %v387, %v391
    %v400 = vadd.f32 %v388, %v392
    %v401 = vadd.f32 %v389, %v393
    %v402 = vpack.c.bf16 %v395, %v394
    %v403 = vpack.c.bf16 %v397, %v396
    %v404 = vpack.c.bf16 %v399, %v398
    %v405 = vpack.c.bf16 %v401, %v400
    %v406 = vunpack.c.l.bf16 %v402
    %v407 = vunpack.c.h.bf16 %v402
    %v408 = vunpack.c.l.bf16 %v403
    %v409 = vunpack.c.h.bf16 %v403
    %v410 = vunpack.c.l.bf16 %v404
    %v411 = vunpack.c.h.bf16 %v404
    %v412 = vunpack.c.l.bf16 %v405
    %v413 = vunpack.c.h.bf16 %v405
    %v414 = vmul.f32 %v406, 0.5
    %v415 = vmul.f32 %v407, 0.5
    %v416 = vmul.f32 %v408, 0.5
    %v417 = vmul.f32 %v409, 0.5
    %v418 = vmul.f32 %v410, 0.5
    %v419 = vmul.f32 %v411, 0.5
    %v420 = vmul.f32 %v412, 0.5
    %v421 = vmul.f32 %v413, 0.5
    %v422 = vpack.c.bf16 %v415, %v414
    %v423 = vpack.c.bf16 %v417, %v416
    %v424 = vpack.c.bf16 %v419, %v418
    %v425 = vpack.c.bf16 %v421, %v420
    %v426 = vunpack.c.l.bf16 %v422
    %v427 = vunpack.c.h.bf16 %v422
    %v428 = vunpack.c.l.bf16 %v423
    %v429 = vunpack.c.h.bf16 %v423
    %v430 = vunpack.c.l.bf16 %v424
    %v431 = vunpack.c.h.bf16 %v424
    %v432 = vunpack.c.l.bf16 %v425
    %v433 = vunpack.c.h.bf16 %v425
    %v434 = vtanh.pop %v426
    %v435 = vtanh.pop %v427
    %v436 = vtanh.pop %v428
    %v437 = vtanh.pop %v429
    %v438 = vtanh.pop %v430
    %v439 = vtanh.pop %v431
    %v440 = vtanh.pop %v432
    %v441 = vtanh.pop %v433
    %v442 = vpack.c.bf16 %v435, %v434
    %v443 = vpack.c.bf16 %v437, %v436
    %v444 = vpack.c.bf16 %v439, %v438
    %v445 = vpack.c.bf16 %v441, %v440
    %v446 = vunpack.c.l.bf16 %v442
    %v447 = vunpack.c.h.bf16 %v442
    %v448 = vunpack.c.l.bf16 %v443
    %v449 = vunpack.c.h.bf16 %v443
    %v450 = vunpack.c.l.bf16 %v444
    %v451 = vunpack.c.h.bf16 %v444
    %v452 = vunpack.c.l.bf16 %v445
    %v453 = vunpack.c.h.bf16 %v445
    %v454 = vmul.f32 %v446, 0.5
    %v455 = vmul.f32 %v447, 0.5
    %v456 = vmul.f32 %v448, 0.5
    %v457 = vmul.f32 %v449, 0.5
    %v458 = vmul.f32 %v450, 0.5
    %v459 = vmul.f32 %v451, 0.5
    %v460 = vmul.f32 %v452, 0.5
    %v461 = vmul.f32 %v453, 0.5
    %v462 = vpack.c.bf16 %v455, %v454
    %v463 = vpack.c.bf16 %v457, %v456
    %v464 = vpack.c.bf16 %v459, %v458
    %v465 = vpack.c.bf16 %v461, %v460
    %v466 = vunpack.c.l.bf16 %v462
    %v467 = vunpack.c.h.bf16 %v462
    %v468 = vunpack.c.l.bf16 %v463
    %v469 = vunpack.c.h.bf16 %v463
    %v470 = vunpack.c.l.bf16 %v464
    %v471 = vunpack.c.h.bf16 %v464
    %v472 = vunpack.c.l.bf16 %v465
    %v473 = vunpack.c.h.bf16 %v465
    %v474 = vadd.f32 %v466, 0.5
    %v475 = vadd.f32 %v467, 0.5
    %v476 = vadd.f32 %v468, 0.5
    %v477 = vadd.f32 %v469, 0.5
    %v478 = vadd.f32 %v470, 0.5
    %v479 = vadd.f32 %v471, 0.5
    %v480 = vadd.f32 %v472, 0.5
    %v481 = vadd.f32 %v473, 0.5
    %v482 = vpack.c.bf16 %v478, %v474
    %v483 = vpack.c.bf16 %v479, %v475
    %v484 = vpack.c.bf16 %v480, %v476
    %v485 = vpack.c.bf16 %v481, %v477
    %v486 = vld [vmem:[#allocation8] sm:$0xff]
    %v487 = vld [vmem:[#allocation8 + $0x8] sm:$0xff]
    %v488 = vld [vmem:[#allocation8 + $0x10] sm:$0xff]
    %v489 = vld [vmem:[#allocation8 + $0x18] sm:$0xff]
    %v490 = vld [vmem:[#allocation8 + $0x20] sm:$0xff]
    %v491 = vld [vmem:[#allocation8 + $0x28] sm:$0xff]
    %v492 = vld [vmem:[#allocation8 + $0x30] sm:$0xff]
    %v493 = vld [vmem:[#allocation8 + $0x38] sm:$0xff]
    %v494 = vld [vmem:[#allocation8 + $0x40] sm:$0xff]
    %v495 = vld [vmem:[#allocation8 + $0x48] sm:$0xff]
    %v496 = vld [vmem:[#allocation8 + $0x50] sm:$0xff]
    %v497 = vld [vmem:[#allocation8 + $0x58] sm:$0xff]
    %v498 = vld [vmem:[#allocation8 + $0x60] sm:$0xff]
    %v499 = vld [vmem:[#allocation8 + $0x68] sm:$0xff]
    %v500 = vld [vmem:[#allocation8 + $0x70] sm:$0xff]
    %v501 = vld [vmem:[#allocation8 + $0x78] sm:$0xff]
    %v502 = vld [vmem:[#allocation8 + $0x80] sm:$0xff]
    %v503 = vld [vmem:[#allocation8 + $0x88] sm:$0xff]
    %v504 = vld [vmem:[#allocation8 + $0x90] sm:$0xff]
    %v505 = vld [vmem:[#allocation8 + $0x98] sm:$0xff]
    %v506 = vld [vmem:[#allocation8 + $0xa0] sm:$0xff]
    %v507 = vld [vmem:[#allocation8 + $0xa8] sm:$0xff]
    %v508 = vld [vmem:[#allocation8 + $0xb0] sm:$0xff]
    %v509 = vld [vmem:[#allocation8 + $0xb8] sm:$0xff]
    %v510 = vld [vmem:[#allocation8 + $0xc0] sm:$0xff]
    %v511 = vld [vmem:[#allocation8 + $0xc8] sm:$0xff]
    %v512 = vld [vmem:[#allocation8 + $0xd0] sm:$0xff]
    %v513 = vld [vmem:[#allocation8 + $0xd8] sm:$0xff]
    %v514 = vld [vmem:[#allocation8 + $0xe0] sm:$0xff]
    %v515 = vld [vmem:[#allocation8 + $0xe8] sm:$0xff]
    %v516 = vld [vmem:[#allocation8 + $0xf0] sm:$0xff]
    %v517 = vld [vmem:[#allocation8 + $0xf8] sm:$0xff]
    %v518 = vld [vmem:[#allocation8 + $0x100] sm:$0xff]
    %v519 = vld [vmem:[#allocation8 + $0x108] sm:$0xff]
    %v520 = vld [vmem:[#allocation8 + $0x110] sm:$0xff]
    %v521 = vld [vmem:[#allocation8 + $0x118] sm:$0xff]
    %v522 = vld [vmem:[#allocation8 + $0x120] sm:$0xff]
    %v523 = vld [vmem:[#allocation8 + $0x128] sm:$0xff]
    %v524 = vld [vmem:[#allocation8 + $0x130] sm:$0xff]
    %v525 = vld [vmem:[#allocation8 + $0x138] sm:$0xff]
    %v526 = vld [vmem:[#allocation8 + $0x140] sm:$0xff]
    %v527 = vld [vmem:[#allocation8 + $0x148] sm:$0xff]
    %v528 = vld [vmem:[#allocation8 + $0x150] sm:$0xff]
    %v529 = vld [vmem:[#allocation8 + $0x158] sm:$0xff]
    %v530 = vld [vmem:[#allocation8 + $0x160] sm:$0xff]
    %v531 = vld [vmem:[#allocation8 + $0x168] sm:$0xff]
    %v532 = vld [vmem:[#allocation8 + $0x170] sm:$0xff]
    %v533 = vld [vmem:[#allocation8 + $0x178] sm:$0xff]
    %v534 = vld [vmem:[#allocation8 + $0x180] sm:$0xff]
    %v535 = vld [vmem:[#allocation8 + $0x188] sm:$0xff]
    %v536 = vld [vmem:[#allocation8 + $0x190] sm:$0xff]
    %v537 = vld [vmem:[#allocation8 + $0x198] sm:$0xff]
    %v538 = vld [vmem:[#allocation8 + $0x1a0] sm:$0xff]
    %v539 = vld [vmem:[#allocation8 + $0x1a8] sm:$0xff]
    %v540 = vld [vmem:[#allocation8 + $0x1b0] sm:$0xff]
    %v541 = vld [vmem:[#allocation8 + $0x1b8] sm:$0xff]
    %v542 = vld [vmem:[#allocation8 + $0x1c0] sm:$0xff]
    %v543 = vld [vmem:[#allocation8 + $0x1c8] sm:$0xff]
    %v544 = vld [vmem:[#allocation8 + $0x1d0] sm:$0xff]
    %v545 = vld [vmem:[#allocation8 + $0x1d8] sm:$0xff]
    %v546 = vld [vmem:[#allocation8 + $0x1e0] sm:$0xff]
    %v547 = vld [vmem:[#allocation8 + $0x1e8] sm:$0xff]
    %v548 = vld [vmem:[#allocation8 + $0x1f0] sm:$0xff]
    %v549 = vld [vmem:[#allocation8 + $0x1f8] sm:$0xff]
    %v614 = vunpack.c.l.b16 %v486
    %v615 = vunpack.c.h.b16 %v486
    %v616 = vunpack.c.l.b16 %v487
    %v617 = vunpack.c.h.b16 %v487
    %v618 = vunpack.c.l.b16 %v488
    %v619 = vunpack.c.h.b16 %v488
    %v620 = vunpack.c.l.b16 %v489
    %v621 = vunpack.c.h.b16 %v489
    %v622 = vunpack.c.l.b16 %v490
    %v623 = vunpack.c.h.b16 %v490
    %v624 = vunpack.c.l.b16 %v491
    %v625 = vunpack.c.h.b16 %v491
    %v626 = vunpack.c.l.b16 %v492
    %v627 = vunpack.c.h.b16 %v492
    %v628 = vunpack.c.l.b16 %v493
    %v629 = vunpack.c.h.b16 %v493
    %v630 = vunpack.c.l.b16 %v494
    %v631 = vunpack.c.h.b16 %v494
    %v632 = vunpack.c.l.b16 %v495
    %v633 = vunpack.c.h.b16 %v495
    %v634 = vunpack.c.l.b16 %v496
    %v635 = vunpack.c.h.b16 %v496
    %v636 = vunpack.c.l.b16 %v497
    %v637 = vunpack.c.h.b16 %v497
    %v638 = vunpack.c.l.b16 %v498
    %v639 = vunpack.c.h.b16 %v498
    %v640 = vunpack.c.l.b16 %v499
    %v641 = vunpack.c.h.b16 %v499
    %v642 = vunpack.c.l.b16 %v500
    %v643 = vunpack.c.h.b16 %v500
    %v644 = vunpack.c.l.b16 %v501
    %v645 = vunpack.c.h.b16 %v501
    %v646 = vunpack.c.l.b16 %v502
    %v647 = vunpack.c.h.b16 %v502
    %v648 = vunpack.c.l.b16 %v503
    %v649 = vunpack.c.h.b16 %v503
    %v650 = vunpack.c.l.b16 %v504
    %v651 = vunpack.c.h.b16 %v504
    %v652 = vunpack.c.l.b16 %v505
    %v653 = vunpack.c.h.b16 %v505
    %v654 = vunpack.c.l.b16 %v506
    %v655 = vunpack.c.h.b16 %v506
    %v656 = vunpack.c.l.b16 %v507
    %v657 = vunpack.c.h.b16 %v507
    %v658 = vunpack.c.l.b16 %v508
    %v659 = vunpack.c.h.b16 %v508
    %v660 = vunpack.c.l.b16 %v509
    %v661 = vunpack.c.h.b16 %v509
    %v662 = vunpack.c.l.b16 %v510
    %v663 = vunpack.c.h.b16 %v510
    %v664 = vunpack.c.l.b16 %v511
    %v665 = vunpack.c.h.b16 %v511
    %v666 = vunpack.c.l.b16 %v512
    %v667 = vunpack.c.h.b16 %v512
    %v668 = vunpack.c.l.b16 %v513
    %v669 = vunpack.c.h.b16 %v513
    %v670 = vunpack.c.l.b16 %v514
    %v671 = vunpack.c.h.b16 %v514
    %v672 = vunpack.c.l.b16 %v515
    %v673 = vunpack.c.h.b16 %v515
    %v674 = vunpack.c.l.b16 %v516
    %v675 = vunpack.c.h.b16 %v516
    %v676 = vunpack.c.l.b16 %v517
    %v677 = vunpack.c.h.b16 %v517
    %v678 = vunpack.c.l.b16 %v518
    %v679 = vunpack.c.h.b16 %v518
    %v680 = vunpack.c.l.b16 %v519
    %v681 = vunpack.c.h.b16 %v519
    %v682 = vunpack.c.l.b16 %v520
    %v683 = vunpack.c.h.b16 %v520
    %v684 = vunpack.c.l.b16 %v521
    %v685 = vunpack.c.h.b16 %v521
    %v686 = vunpack.c.l.b16 %v522
    %v687 = vunpack.c.h.b16 %v522
    %v688 = vunpack.c.l.b16 %v523
    %v689 = vunpack.c.h.b16 %v523
    %v690 = vunpack.c.l.b16 %v524
    %v691 = vunpack.c.h.b16 %v524
    %v692 = vunpack.c.l.b16 %v525
    %v693 = vunpack.c.h.b16 %v525
    %v694 = vunpack.c.l.b16 %v526
    %v695 = vunpack.c.h.b16 %v526
    %v696 = vunpack.c.l.b16 %v527
    %v697 = vunpack.c.h.b16 %v527
    %v698 = vunpack.c.l.b16 %v528
    %v699 = vunpack.c.h.b16 %v528
    %v700 = vunpack.c.l.b16 %v529
    %v701 = vunpack.c.h.b16 %v529
    %v702 = vunpack.c.l.b16 %v530
    %v703 = vunpack.c.h.b16 %v530
    %v704 = vunpack.c.l.b16 %v531
    %v705 = vunpack.c.h.b16 %v531
    %v706 = vunpack.c.l.b16 %v532
    %v707 = vunpack.c.h.b16 %v532
    %v708 = vunpack.c.l.b16 %v533
    %v709 = vunpack.c.h.b16 %v533
    %v710 = vunpack.c.l.b16 %v534
    %v711 = vunpack.c.h.b16 %v534
    %v712 = vunpack.c.l.b16 %v535
    %v713 = vunpack.c.h.b16 %v535
    %v714 = vunpack.c.l.b16 %v536
    %v715 = vunpack.c.h.b16 %v536
    %v716 = vunpack.c.l.b16 %v537
    %v717 = vunpack.c.h.b16 %v537
    %v718 = vunpack.c.l.b16 %v538
    %v719 = vunpack.c.h.b16 %v538
    %v720 = vunpack.c.l.b16 %v539
    %v721 = vunpack.c.h.b16 %v539
    %v722 = vunpack.c.l.b16 %v540
    %v723 = vunpack.c.h.b16 %v540
    %v724 = vunpack.c.l.b16 %v541
    %v725 = vunpack.c.h.b16 %v541
    %v726 = vunpack.c.l.b16 %v542
    %v727 = vunpack.c.h.b16 %v542
    %v728 = vunpack.c.l.b16 %v543
    %v729 = vunpack.c.h.b16 %v543
    %v730 = vunpack.c.l.b16 %v544
    %v731 = vunpack.c.h.b16 %v544
    %v732 = vunpack.c.l.b16 %v545
    %v733 = vunpack.c.h.b16 %v545
    %v734 = vunpack.c.l.b16 %v546
    %v735 = vunpack.c.h.b16 %v546
    %v736 = vunpack.c.l.b16 %v547
    %v737 = vunpack.c.h.b16 %v547
    %v738 = vunpack.c.l.b16 %v548
    %v739 = vunpack.c.h.b16 %v548
    %v740 = vunpack.c.l.b16 %v549
    %v741 = vunpack.c.h.b16 %v549
    %v742 = vpack.c.b16 %v616, %v614
    %v743 = vpack.c.b16 %v617, %v615
    %v744 = vpack.c.b16 %v620, %v618
    %v745 = vpack.c.b16 %v621, %v619
    %v746 = vpack.c.b16 %v624, %v622
    %v747 = vpack.c.b16 %v625, %v623
    %v748 = vpack.c.b16 %v628, %v626
    %v749 = vpack.c.b16 %v629, %v627
    %v750 = vpack.c.b16 %v632, %v630
    %v751 = vpack.c.b16 %v633, %v631
    %v752 = vpack.c.b16 %v636, %v634
    %v753 = vpack.c.b16 %v637, %v635
    %v754 = vpack.c.b16 %v640, %v638
    %v755 = vpack.c.b16 %v641, %v639
    %v756 = vpack.c.b16 %v644, %v642
    %v757 = vpack.c.b16 %v645, %v643
    %v758 = vpack.c.b16 %v648, %v646
    %v759 = vpack.c.b16 %v649, %v647
    %v760 = vpack.c.b16 %v652, %v650
    %v761 = vpack.c.b16 %v653, %v651
    %v762 = vpack.c.b16 %v656, %v654
    %v763 = vpack.c.b16 %v657, %v655
    %v764 = vpack.c.b16 %v660, %v658
    %v765 = vpack.c.b16 %v661, %v659
    %v766 = vpack.c.b16 %v664, %v662
    %v767 = vpack.c.b16 %v665, %v663
    %v768 = vpack.c.b16 %v668, %v666
    %v769 = vpack.c.b16 %v669, %v667
    %v770 = vpack.c.b16 %v672, %v670
    %v771 = vpack.c.b16 %v673, %v671
    %v772 = vpack.c.b16 %v676, %v674
    %v773 = vpack.c.b16 %v677, %v675
    %v774 = vpack.c.b16 %v680, %v678
    %v775 = vpack.c.b16 %v681, %v679
    %v776 = vpack.c.b16 %v684, %v682
    %v777 = vpack.c.b16 %v685, %v683
    %v778 = vpack.c.b16 %v688, %v686
    %v779 = vpack.c.b16 %v689, %v687
    %v780 = vpack.c.b16 %v692, %v690
    %v781 = vpack.c.b16 %v693, %v691
    %v782 = vpack.c.b16 %v696, %v694
    %v783 = vpack.c.b16 %v697, %v695
    %v784 = vpack.c.b16 %v700, %v698
    %v785 = vpack.c.b16 %v701, %v699
    %v786 = vpack.c.b16 %v704, %v702
    %v787 = vpack.c.b16 %v705, %v703
    %v788 = vpack.c.b16 %v708, %v706
    %v789 = vpack.c.b16 %v709, %v707
    %v790 = vpack.c.b16 %v712, %v710
    %v791 = vpack.c.b16 %v713, %v711
    %v792 = vpack.c.b16 %v716, %v714
    %v793 = vpack.c.b16 %v717, %v715
    %v794 = vpack.c.b16 %v720, %v718
    %v795 = vpack.c.b16 %v721, %v719
    %v796 = vpack.c.b16 %v724, %v722
    %v797 = vpack.c.b16 %v725, %v723
    %v798 = vpack.c.b16 %v728, %v726
    %v799 = vpack.c.b16 %v729, %v727
    %v800 = vpack.c.b16 %v732, %v730
    %v801 = vpack.c.b16 %v733, %v731
    %v802 = vpack.c.b16 %v736, %v734
    %v803 = vpack.c.b16 %v737, %v735
    %v804 = vpack.c.b16 %v740, %v738
    %v805 = vpack.c.b16 %v741, %v739
    %870 = vmatpush.bf16.msra.mxu0 %v756
    %871 = vmatpush.bf16.msra.mxu0 %v754
    %872 = vmatpush.bf16.msra.mxu0 %v752
    %873 = vmatpush.bf16.msra.mxu0 %v750
    %874 = vmatpush.bf16.msra.mxu0 %v748
    %875 = vmatpush.bf16.msra.mxu0 %v746
    %876 = vmatpush.bf16.msra.mxu0 %v744
    %877 = vmatpush.bf16.msra.mxu0 %v742
    %878 = vmatmul.bf16.gmra.mxu0 %v482
    %v879 = vpop.f32.mrf.mxu0
    %v880 = vadd.f32 0.0, %v879
    %v881 = vpop.f32.mrf.mxu0
    %v882 = vadd.f32 0.0, %v881
    %883 = vdwg.mxu0
    %884 = vmatpush.bf16.msra.mxu0 %v772
    %885 = vmatpush.bf16.msra.mxu0 %v770
    %886 = vmatpush.bf16.msra.mxu0 %v768
    %887 = vmatpush.bf16.msra.mxu0 %v766
    %888 = vmatpush.bf16.msra.mxu0 %v764
    %889 = vmatpush.bf16.msra.mxu0 %v762
    %890 = vmatpush.bf16.msra.mxu0 %v760
    %891 = vmatpush.bf16.msra.mxu0 %v758
    %892 = vmatmul.bf16.gmra.mxu0 %v483
    %v893 = vpop.f32.mrf.mxu0
    %v894 = vadd.f32 %v880, %v893
    %v895 = vpop.f32.mrf.mxu0
    %v896 = vadd.f32 %v882, %v895
    %897 = vdwg.mxu0
    %898 = vmatpush.bf16.msra.mxu0 %v788
    %899 = vmatpush.bf16.msra.mxu0 %v786
    %900 = vmatpush.bf16.msra.mxu0 %v784
    %901 = vmatpush.bf16.msra.mxu0 %v782
    %902 = vmatpush.bf16.msra.mxu0 %v780
    %903 = vmatpush.bf16.msra.mxu0 %v778
    %904 = vmatpush.bf16.msra.mxu0 %v776
    %905 = vmatpush.bf16.msra.mxu0 %v774
    %906 = vmatmul.bf16.gmra.mxu0 %v484
    %v907 = vpop.f32.mrf.mxu0
    %v908 = vadd.f32 %v894, %v907
    %v909 = vpop.f32.mrf.mxu0
    %v910 = vadd.f32 %v896, %v909
    %911 = vdwg.mxu0
    %912 = vmatpush.bf16.msra.mxu0 %v804
    %913 = vmatpush.bf16.msra.mxu0 %v802
    %914 = vmatpush.bf16.msra.mxu0 %v800
    %915 = vmatpush.bf16.msra.mxu0 %v798
    %916 = vmatpush.bf16.msra.mxu0 %v796
    %917 = vmatpush.bf16.msra.mxu0 %v794
    %918 = vmatpush.bf16.msra.mxu0 %v792
    %919 = vmatpush.bf16.msra.mxu0 %v790
    %920 = vmatmul.bf16.gmra.mxu0 %v485
    %v921 = vpop.f32.mrf.mxu0
    %v922 = vadd.f32 %v908, %v921
    %v923 = vpop.f32.mrf.mxu0
    %v924 = vadd.f32 %v910, %v923
    %925 = vdwg.mxu0
    %926 = vmatpush.bf16.msra.mxu0 %v757
    %927 = vmatpush.bf16.msra.mxu0 %v755
    %928 = vmatpush.bf16.msra.mxu0 %v753
    %929 = vmatpush.bf16.msra.mxu0 %v751
    %930 = vmatpush.bf16.msra.mxu0 %v749
    %931 = vmatpush.bf16.msra.mxu0 %v747
    %932 = vmatpush.bf16.msra.mxu0 %v745
    %933 = vmatpush.bf16.msra.mxu0 %v743
    %934 = vmatmul.bf16.gmra.mxu0 %v482
    %v935 = vpop.f32.mrf.mxu0
    %v936 = vadd.f32 0.0, %v935
    %v937 = vpop.f32.mrf.mxu0
    %v938 = vadd.f32 0.0, %v937
    %939 = vdwg.mxu0
    %940 = vmatpush.bf16.msra.mxu0 %v773
    %941 = vmatpush.bf16.msra.mxu0 %v771
    %942 = vmatpush.bf16.msra.mxu0 %v769
    %943 = vmatpush.bf16.msra.mxu0 %v767
    %944 = vmatpush.bf16.msra.mxu0 %v765
    %945 = vmatpush.bf16.msra.mxu0 %v763
    %946 = vmatpush.bf16.msra.mxu0 %v761
    %947 = vmatpush.bf16.msra.mxu0 %v759
    %948 = vmatmul.bf16.gmra.mxu0 %v483
    %v949 = vpop.f32.mrf.mxu0
    %v950 = vadd.f32 %v936, %v949
    %v951 = vpop.f32.mrf.mxu0
    %v952 = vadd.f32 %v938, %v951
    %953 = vdwg.mxu0
    %954 = vmatpush.bf16.msra.mxu0 %v789
    %955 = vmatpush.bf16.msra.mxu0 %v787
    %956 = vmatpush.bf16.msra.mxu0 %v785
    %957 = vmatpush.bf16.msra.mxu0 %v783
    %958 = vmatpush.bf16.msra.mxu0 %v781
    %959 = vmatpush.bf16.msra.mxu0 %v779
    %960 = vmatpush.bf16.msra.mxu0 %v777
    %961 = vmatpush.bf16.msra.mxu0 %v775
    %962 = vmatmul.bf16.gmra.mxu0 %v484
    %v963 = vpop.f32.mrf.mxu0
    %v964 = vadd.f32 %v950, %v963
    %v965 = vpop.f32.mrf.mxu0
    %v966 = vadd.f32 %v952, %v965
    %967 = vdwg.mxu0
    %968 = vmatpush.bf16.msra.mxu0 %v805
    %969 = vmatpush.bf16.msra.mxu0 %v803
    %970 = vmatpush.bf16.msra.mxu0 %v801
    %971 = vmatpush.bf16.msra.mxu0 %v799
    %972 = vmatpush.bf16.msra.mxu0 %v797
    %973 = vmatpush.bf16.msra.mxu0 %v795
    %974 = vmatpush.bf16.msra.mxu0 %v793
    %975 = vmatpush.bf16.msra.mxu0 %v791
    %976 = vmatmul.bf16.gmra.mxu0 %v485
    %v977 = vpop.f32.mrf.mxu0
    %v978 = vadd.f32 %v964, %v977
    %v979 = vpop.f32.mrf.mxu0
    %v980 = vadd.f32 %v966, %v979
    %981 = vdwg.mxu0
    %v982 = vpack.c.bf16 %v978, %v922
    %v983 = vpack.c.bf16 %v980, %v924
    %v984 = vld [vmem:[%s4] sm:$0x3]
    %986 = vst [vmem:[#allocation1] ss:$9 sm:$0xff] %v984
    %v987 = vld [vmem:[#allocation1] sm:$0xff]
    %v988 = vld [vmem:[#allocation1 + $0x9] sm:$0xff]
    %v989 = vpack.i.b16 %v987, %v987
    %v991 = vperm.slane %v989, 0
    %v992 = vpack.i.b16 %v988, %v988
    %v994 = vperm.slane %v992, 0
    %v995 = vunpack.c.l.bf16 %v982
    %v996 = vunpack.c.h.bf16 %v982
    %v997 = vunpack.c.l.bf16 %v983
    %v998 = vunpack.c.h.bf16 %v983
    %v999 = vunpack.c.l.bf16 %v991
    %v1000 = vunpack.c.l.bf16 %v994
    %v1001 = vadd.f32 %v995, %v999
    %v1002 = vadd.f32 %v996, %v1000
    %v1003 = vadd.f32 %v997, %v999
    %v1004 = vadd.f32 %v998, %v1000
    %v1005 = vpack.c.bf16 %v1002, %v1001
    %v1006 = vpack.c.bf16 %v1004, %v1003
    %v1007 = vunpack.c.l.bf16 %v1005
    %v1008 = vunpack.c.h.bf16 %v1005
    %v1009 = vunpack.c.l.bf16 %v1006
    %v1010 = vunpack.c.h.bf16 %v1006
    %v1011 = vmul.f32 %v1007, 0.5
    %v1012 = vmul.f32 %v1008, 0.5
    %v1013 = vmul.f32 %v1009, 0.5
    %v1014 = vmul.f32 %v1010, 0.5
    %v1015 = vpack.c.bf16 %v1012, %v1011
    %v1016 = vpack.c.bf16 %v1014, %v1013
    %v1017 = vunpack.c.l.bf16 %v1015
    %v1018 = vunpack.c.h.bf16 %v1015
    %v1019 = vunpack.c.l.bf16 %v1016
    %v1020 = vunpack.c.h.bf16 %v1016
    %v1021 = vtanh.pop %v1017
    %v1022 = vtanh.pop %v1018
    %v1023 = vtanh.pop %v1019
    %v1024 = vtanh.pop %v1020
    %v1025 = vpack.c.bf16 %v1022, %v1021
    %v1026 = vpack.c.bf16 %v1024, %v1023
    %v1027 = vunpack.c.l.bf16 %v1025
    %v1028 = vunpack.c.h.bf16 %v1025
    %v1029 = vunpack.c.l.bf16 %v1026
    %v1030 = vunpack.c.h.bf16 %v1026
    %v1031 = vmul.f32 %v1027, 0.5
    %v1032 = vmul.f32 %v1028, 0.5
    %v1033 = vmul.f32 %v1029, 0.5
    %v1034 = vmul.f32 %v1030, 0.5
    %v1035 = vpack.c.bf16 %v1032, %v1031
    %v1036 = vpack.c.bf16 %v1034, %v1033
    %v1037 = vunpack.c.l.bf16 %v1035
    %v1038 = vunpack.c.h.bf16 %v1035
    %v1039 = vunpack.c.l.bf16 %v1036
    %v1040 = vunpack.c.h.bf16 %v1036
    %v1041 = vadd.f32 %v1037, 0.5
    %v1042 = vadd.f32 %v1038, 0.5
    %v1043 = vadd.f32 %v1039, 0.5
    %v1044 = vadd.f32 %v1040, 0.5
    %v1045 = vpack.c.bf16 %v1043, %v1041
    %v1046 = vpack.c.bf16 %v1044, %v1042
    %v1047 = vld [vmem:[#allocation10] sm:$0xf]
    %v1048 = vld [vmem:[#allocation10 + $0x4] sm:$0xf]
    %v1049 = vld [vmem:[#allocation10 + $0x8] sm:$0xf]
    %v1050 = vld [vmem:[#allocation10 + $0xc] sm:$0xf]
    %v1051 = vld [vmem:[#allocation10 + $0x10] sm:$0xf]
    %v1052 = vld [vmem:[#allocation10 + $0x14] sm:$0xf]
    %v1053 = vld [vmem:[#allocation10 + $0x18] sm:$0xf]
    %v1054 = vld [vmem:[#allocation10 + $0x1c] sm:$0xf]
    %v1055 = vld [vmem:[#allocation10 + $0x20] sm:$0xf]
    %v1056 = vld [vmem:[#allocation10 + $0x24] sm:$0xf]
    %v1057 = vld [vmem:[#allocation10 + $0x28] sm:$0xf]
    %v1058 = vld [vmem:[#allocation10 + $0x2c] sm:$0xf]
    %v1059 = vld [vmem:[#allocation10 + $0x30] sm:$0xf]
    %v1060 = vld [vmem:[#allocation10 + $0x34] sm:$0xf]
    %v1061 = vld [vmem:[#allocation10 + $0x38] sm:$0xf]
    %v1062 = vld [vmem:[#allocation10 + $0x3c] sm:$0xf]
    %v1063 = vld [vmem:[#allocation10 + $0x40] sm:$0xf]
    %v1064 = vld [vmem:[#allocation10 + $0x44] sm:$0xf]
    %v1065 = vld [vmem:[#allocation10 + $0x48] sm:$0xf]
    %v1066 = vld [vmem:[#allocation10 + $0x4c] sm:$0xf]
    %v1067 = vld [vmem:[#allocation10 + $0x50] sm:$0xf]
    %v1068 = vld [vmem:[#allocation10 + $0x54] sm:$0xf]
    %v1069 = vld [vmem:[#allocation10 + $0x58] sm:$0xf]
    %v1070 = vld [vmem:[#allocation10 + $0x5c] sm:$0xf]
    %v1071 = vld [vmem:[#allocation10 + $0x60] sm:$0xf]
    %v1072 = vld [vmem:[#allocation10 + $0x64] sm:$0xf]
    %v1073 = vld [vmem:[#allocation10 + $0x68] sm:$0xf]
    %v1074 = vld [vmem:[#allocation10 + $0x6c] sm:$0xf]
    %v1075 = vld [vmem:[#allocation10 + $0x70] sm:$0xf]
    %v1076 = vld [vmem:[#allocation10 + $0x74] sm:$0xf]
    %v1077 = vld [vmem:[#allocation10 + $0x78] sm:$0xf]
    %v1078 = vld [vmem:[#allocation10 + $0x7c] sm:$0xf]
    %v1111 = vunpack.c.l.b16 %v1047
    %v1112 = vunpack.c.l.b16 %v1048
    %v1113 = vunpack.c.l.b16 %v1049
    %v1114 = vunpack.c.l.b16 %v1050
    %v1115 = vunpack.c.l.b16 %v1051
    %v1116 = vunpack.c.l.b16 %v1052
    %v1117 = vunpack.c.l.b16 %v1053
    %v1118 = vunpack.c.l.b16 %v1054
    %v1119 = vunpack.c.l.b16 %v1055
    %v1120 = vunpack.c.l.b16 %v1056
    %v1121 = vunpack.c.l.b16 %v1057
    %v1122 = vunpack.c.l.b16 %v1058
    %v1123 = vunpack.c.l.b16 %v1059
    %v1124 = vunpack.c.l.b16 %v1060
    %v1125 = vunpack.c.l.b16 %v1061
    %v1126 = vunpack.c.l.b16 %v1062
    %v1127 = vunpack.c.l.b16 %v1063
    %v1128 = vunpack.c.l.b16 %v1064
    %v1129 = vunpack.c.l.b16 %v1065
    %v1130 = vunpack.c.l.b16 %v1066
    %v1131 = vunpack.c.l.b16 %v1067
    %v1132 = vunpack.c.l.b16 %v1068
    %v1133 = vunpack.c.l.b16 %v1069
    %v1134 = vunpack.c.l.b16 %v1070
    %v1135 = vunpack.c.l.b16 %v1071
    %v1136 = vunpack.c.l.b16 %v1072
    %v1137 = vunpack.c.l.b16 %v1073
    %v1138 = vunpack.c.l.b16 %v1074
    %v1139 = vunpack.c.l.b16 %v1075
    %v1140 = vunpack.c.l.b16 %v1076
    %v1141 = vunpack.c.l.b16 %v1077
    %v1142 = vunpack.c.l.b16 %v1078
    %v1143 = vpack.c.b16 %v1112, %v1111
    %v1144 = vpack.c.b16 %v1114, %v1113
    %v1145 = vpack.c.b16 %v1116, %v1115
    %v1146 = vpack.c.b16 %v1118, %v1117
    %v1147 = vpack.c.b16 %v1120, %v1119
    %v1148 = vpack.c.b16 %v1122, %v1121
    %v1149 = vpack.c.b16 %v1124, %v1123
    %v1150 = vpack.c.b16 %v1126, %v1125
    %v1151 = vpack.c.b16 %v1128, %v1127
    %v1152 = vpack.c.b16 %v1130, %v1129
    %v1153 = vpack.c.b16 %v1132, %v1131
    %v1154 = vpack.c.b16 %v1134, %v1133
    %v1155 = vpack.c.b16 %v1136, %v1135
    %v1156 = vpack.c.b16 %v1138, %v1137
    %v1157 = vpack.c.b16 %v1140, %v1139
    %v1158 = vpack.c.b16 %v1142, %v1141
    %1175 = vmatpush.bf16.msra.mxu0 %v1150
    %1176 = vmatpush.bf16.msra.mxu0 %v1149
    %1177 = vmatpush.bf16.msra.mxu0 %v1148
    %1178 = vmatpush.bf16.msra.mxu0 %v1147
    %1179 = vmatpush.bf16.msra.mxu0 %v1146
    %1180 = vmatpush.bf16.msra.mxu0 %v1145
    %1181 = vmatpush.bf16.msra.mxu0 %v1144
    %1182 = vmatpush.bf16.msra.mxu0 %v1143
    %1183 = vmatmul.bf16.gmra.mxu0 %v1045
    %v1184 = vpop.f32.mrf.mxu0
    %v1185 = vadd.f32 0.0, %v1184
    %v1186 = vpop.f32.mrf.mxu0
    %v1187 = vadd.f32 0.0, %v1186
    %1188 = vdwg.mxu0
    %1189 = vmatpush.bf16.msra.mxu0 %v1158
    %1190 = vmatpush.bf16.msra.mxu0 %v1157
    %1191 = vmatpush.bf16.msra.mxu0 %v1156
    %1192 = vmatpush.bf16.msra.mxu0 %v1155
    %1193 = vmatpush.bf16.msra.mxu0 %v1154
    %1194 = vmatpush.bf16.msra.mxu0 %v1153
    %1195 = vmatpush.bf16.msra.mxu0 %v1152
    %1196 = vmatpush.bf16.msra.mxu0 %v1151
    %1197 = vmatmul.bf16.gmra.mxu0 %v1046
    %v1198 = vpop.f32.mrf.mxu0
    %v1199 = vadd.f32 %v1185, %v1198
    %v1200 = vpop.f32.mrf.mxu0
    %v1201 = vadd.f32 %v1187, %v1200
    %1202 = vdwg.mxu0
    %v1203 = vpack.c.bf16 %v1199, %v1199
    %v1204 = vpack.c.bf16 %v1201, %v1201
    %v1205 = vld [vmem:[%s6] sm:$0x1]
    %v1207 = vpack.i.b16 %v1205, %v1205
    %v1209 = vperm.slane %v1207, 0
    %v1210 = vunpack.c.l.bf16 %v1203
    %v1211 = vunpack.c.l.bf16 %v1204
    %v1212 = vunpack.c.l.bf16 %v1209
    %v1213 = vadd.f32 %v1210, %v1212
    %v1214 = vadd.f32 %v1211, %v1212
    %v1215 = vpack.c.bf16 %v1213, %v1213
    %v1216 = vpack.c.bf16 %v1214, %v1214
    %v1217 = vunpack.c.l.bf16 %v1215
    %v1218 = vunpack.c.l.bf16 %v1216
    %v1219 = vmul.f32 %v1217, 0.5
    %v1220 = vmul.f32 %v1218, 0.5
    %v1221 = vpack.c.bf16 %v1219, %v1219
    %v1222 = vpack.c.bf16 %v1220, %v1220
    %v1223 = vunpack.c.l.bf16 %v1221
    %v1224 = vunpack.c.l.bf16 %v1222
    %v1225 = vtanh.pop %v1223
    %v1226 = vtanh.pop %v1224
    %v1227 = vpack.c.bf16 %v1225, %v1225
    %v1228 = vpack.c.bf16 %v1226, %v1226
    %v1229 = vunpack.c.l.bf16 %v1227
    %v1230 = vunpack.c.l.bf16 %v1228
    %v1231 = vmul.f32 %v1229, 0.5
    %v1232 = vmul.f32 %v1230, 0.5
    %v1233 = vpack.c.bf16 %v1231, %v1231
    %v1234 = vpack.c.bf16 %v1232, %v1232
    %v1235 = vunpack.c.l.bf16 %v1233
    %v1236 = vunpack.c.l.bf16 %v1234
    %v1237 = vadd.f32 %v1235, 0.5
    %v1238 = vadd.f32 %v1236, 0.5
    %v1239 = vpack.c.bf16 %v1237, %v1237
    %v1240 = vpack.c.bf16 %v1238, %v1238
    %1241 = vst [vmem:[#allocation11] sm:$0xf] %v1239
    %1242 = vst [vmem:[#allocation11 + $0x4] sm:$0xf] %v1240
    // Predicated region
    $region50: #{tpu_custom_call.1} parent=1 // pred_check
      _
    $region51: #{tpu_custom_call.1} parent=1 // pred_check_branch
      %1244 = sbr.rel (0) target = $region53
    $region52: #{tpu_custom_call.1} parent=1 // pred_region
      %1246 = vsyncadd [#allocation4], 0
      %s1247 = sshll.u32 [#allocation11], 4
      %s1248 = int_to_ptr.vmem [resolvable:$true] %s1247
      %s1249 = sshll.u32 %s7, 4
      %s1250 = int_to_ptr.hbm [resolvable:$true] %s1249
      %1255 = dma.vmem_to_hbm [thread:$0]  %s1248, 128, %s1250, [#allocation4], 64, 64, 4
    $region53: #{tpu_custom_call.1} parent=1 // pred_fallthru
      _
    // Predicated region
    $region54: #{tpu_custom_call.1} parent=1 // pred_check
      _
    $region55: #{tpu_custom_call.1} parent=1 // pred_check_branch
      %1257 = sbr.rel (0) target = $region57
    $region56: #{tpu_custom_call.1} parent=1 // pred_region
      %1259 = dma.done [#allocation4], 128
    $region57: #{tpu_custom_call.1} parent=1 // pred_fallthru
      _
    %1260 = vsyncpa [#allocation3], 1
    %1261 = vsyncpa [#allocation6], 1
    %1262 = vsyncpa [#allocation9], 1
    %1263 = vsyncpa [#allocation4], 1

</llo_original>
